<compile_context>
chip_gen: v5e
topology: v5e:2x2
jax: 0.10.0
libtpu: 0.0.40
codegen_flags: <defaults>
</compile_context>

<pallas_src>
import jax
import jax.numpy as jnp
from jax.experimental import pallas as pl
from jax.experimental.pallas import tpu as pltpu


def _attention_kernel(ctx_ref, hp_ref, mask_ref, wc_ref, v_ref, out_ref):
    # ctx_ref  : (BT*S, E2)   context rows for this batch tile (bf16 or f32)
    # hp_ref   : (BT, 1, Dp)  f32  hidden @ Wh^T + bias (zero-padded to Dp)
    # mask_ref : (BT, S)      int32 (0 = masked)
    # wc_ref   : (E2, Dp)     context part of attn weight, transposed + padded
    # v_ref    : (1, Dp)      f32  scoring vector (zero-padded)
    # out_ref  : (BT, S)      f32  softmax attention weights
    bt, s = out_ref.shape

    # One big matmul for the whole batch tile; f32 accumulation on the MXU.
    cproj = jnp.dot(ctx_ref[...], wc_ref[...],
                    preferred_element_type=jnp.float32)           # (BT*S, Dp)

    energy = jnp.tanh(cproj.reshape(bt, s, -1) + hp_ref[...])     # (BT, S, Dp)

    # score[b, s] = sum_d v[d] * energy[b, s, d]; the sublane->lane relayout of
    # the (BT, S) result happens once per tile, not once per batch element.
    scores = jnp.sum(energy * v_ref[...], axis=-1)                # (BT, S)

    # Large finite negative: identical softmax result, no NaN if a whole row
    # of the mask is zero.
    scores = jnp.where(mask_ref[...] == 0, -1e30, scores)

    mx = jnp.max(scores, axis=-1, keepdims=True)
    e = jnp.exp(scores - mx)
    out_ref[...] = (e / jnp.sum(e, axis=-1, keepdims=True)).astype(out_ref.dtype)


def attention_pallas(hidden, context, mask, W, b, v, *,
                     compute_dtype=jnp.bfloat16, block_batch=None):
    """Bahdanau attention.

    hidden  : [B, D]        decoder state
    context : [B, S, E2]    encoder outputs (E2 = 2 * enc_hid_dim)
    mask    : [B, S]        0 = masked position
    W       : [D, D + E2]   nn.Linear(enc*2 + dec, dec).weight
    b       : [D]           bias
    v       : [D]           scoring vector
    returns : [B, S]        softmax attention weights (f32)
    """
    B, D = hidden.shape
    _, S, E2 = context.shape
    Dp = ((D + 127) // 128) * 128            # lane-dense MXU N dimension

    # cat order in the PyTorch module is (hidden, context): the first D input
    # columns of W act on `hidden`, the remaining E2 on `context`.
    wh_t = W[:, :D].T                        # [D, D]
    wc_t = W[:, D:].T                        # [E2, D]

    # Hoisted hidden projection (tiny; plain XLA), zero-padded to Dp.
    hproj = (hidden.astype(jnp.float32) @ wh_t.astype(jnp.float32)
             + b.astype(jnp.float32))                              # [B, D]
    hproj = jnp.pad(hproj, ((0, 0), (0, Dp - D))).reshape(B, 1, Dp)

    wc_p = jnp.pad(wc_t, ((0, 0), (0, Dp - D))).astype(compute_dtype)  # [E2, Dp]
    v_p = jnp.pad(v.astype(jnp.float32), (0, Dp - D)).reshape(1, Dp)   # [1, Dp]

    ctx_flat = context.reshape(B * S, E2).astype(compute_dtype)        # [B*S, E2]
    mask_i = mask.astype(jnp.int32)

    # Batch-tile size: biggest tile whose double-buffered context slab fits a
    # conservative VMEM budget that is safe on v5e / v6e / v7x.
    if block_batch is None:
        itemsize = jnp.dtype(compute_dtype).itemsize
        per_batch_bytes = max(1, S * E2 * itemsize)
        budget = 6 * 1024 * 1024             # per context buffer
        bt = max(1, budget // per_batch_bytes)
        bt = min(bt, B)
        if bt < B:
            # sub-batch tiles: keep the sublane dim of the 2-D blocks 8-aligned
            bt = max(8, (bt // 8) * 8)
            bt = min(bt, B)
    else:
        bt = min(block_batch, B)

    grid = (pl.cdiv(B, bt),)

    out = pl.pallas_call(
        _attention_kernel,
        out_shape=jax.ShapeDtypeStruct((B, S), jnp.float32),
        grid=grid,
        in_specs=[
            pl.BlockSpec((bt * S, E2), lambda i: (i, 0)),    # context (flattened)
            pl.BlockSpec((bt, 1, Dp), lambda i: (i, 0, 0)),  # hidden projection
            pl.BlockSpec((bt, S), lambda i: (i, 0)),         # mask
            pl.BlockSpec((E2, Dp), lambda i: (0, 0)),        # Wc^T (resident)
            pl.BlockSpec((1, Dp), lambda i: (0, 0)),         # v    (resident)
        ],
        out_specs=pl.BlockSpec((bt, S), lambda i: (i, 0)),
        compiler_params=pltpu.CompilerParams(
            dimension_semantics=("parallel",),   # >=2 tiles shard across v7x TCs
            vmem_limit_bytes=32 * 1024 * 1024,
        ),
    )(ctx_flat, hproj, mask_i, wc_p, v_p)
    return out


def attention_reference(hidden, context, mask, W, b, v):
    B, S, _ = context.shape
    D = hidden.shape[-1]
    h_rep = jnp.broadcast_to(hidden[:, None, :], (B, S, D))
    x = jnp.concatenate([h_rep, context], axis=-1)
    sim = jnp.tanh(x @ W.T + b)                      # [B, S, D]
    att = jnp.einsum('d,bsd->bs', v, sim)            # [B, S]
    att = jnp.where(mask == 0, -jnp.inf, att)
    return jax.nn.softmax(att, axis=1)


if __name__ == "__main__":
    # Small, module-consistent shapes.
    B, S = 2, 8
    enc_hid_dim, dec_hid_dim = 32, 32
    E2, D = 2 * enc_hid_dim, dec_hid_dim

    key = jax.random.PRNGKey(0)
    k1, k2, k3, k4, k5 = jax.random.split(key, 5)

    hidden = jax.random.normal(k1, (B, D), dtype=jnp.float32)
    context = jax.random.normal(k2, (B, S, E2), dtype=jnp.float32)
    # mask: last two positions of batch 0 are padded (== 0)
    lengths = jnp.array([S - 2, S], dtype=jnp.int32)
    mask = (jnp.arange(S)[None, :] < lengths[:, None]).astype(jnp.int32)

    # Deterministic parameter init (nn.Linear(2E+D, D) weight/bias, v ~ U[0,1))
    bound = 1.0 / jnp.sqrt(jnp.float32(E2 + D))
    W = jax.random.uniform(k3, (D, E2 + D), jnp.float32, -bound, bound)
    b = jax.random.uniform(k4, (D,), jnp.float32, -bound, bound)
    v = jax.random.uniform(k5, (D,), jnp.float32, 0.0, 1.0)

    ref = attention_reference(hidden, context, mask, W, b, v)

    # f32 path: tight check vs reference.
    out_f32 = attention_pallas(hidden, context, mask, W, b, v,
                               compute_dtype=jnp.float32)
    jax.block_until_ready(out_f32)
    assert out_f32.shape == (B, S)
    assert jnp.allclose(out_f32, ref, atol=1e-5, rtol=1e-5), "f32 mismatch"

    # bf16 fast path (mem-bound load halved): looser tolerance from bf16 inputs.
    out_bf16 = attention_pallas(hidden, context, mask, W, b, v,
                                compute_dtype=jnp.bfloat16)
    jax.block_until_ready(out_bf16)
    assert out_bf16.shape == (B, S)
    assert jnp.allclose(out_bf16, ref, atol=2e-2, rtol=2e-2), "bf16 mismatch"

    print("KERNEL_OK")
</pallas_src>

<mosaic_0001>
module attributes {stable_mosaic.version = 11 : i64} {
  func.func @_attention_kernel(%arg0: i32, %arg1: memref<16x64xf32, #tpu.memory_space<vmem>>, %arg2: memref<2x1x128xf32, #tpu.memory_space<vmem>>, %arg3: memref<2x8xi32, #tpu.memory_space<vmem>>, %arg4: memref<64x128xf32, #tpu.memory_space<vmem>>, %arg5: memref<1x128xf32, #tpu.memory_space<vmem>>, %arg6: memref<2x8xf32, #tpu.memory_space<vmem>>) attributes {dimension_semantics = [#tpu.dimension_semantics<parallel>], iteration_bounds = array<i64: 1>, scalar_prefetch = 0 : i64, scratch_operands = 0 : i64, tpu.core_type = #tpu.core_type<tc>, window_params = [{transform_indices = @transform_0, window_bounds = array<i64: 16, 64>}, {transform_indices = @transform_1, window_bounds = array<i64: 2, 1, 128>}, {transform_indices = @transform_2, window_bounds = array<i64: 2, 8>}, {pipeline_mode = #tpu.pipeline_mode<synchronous>, transform_indices = @transform_3, window_bounds = array<i64: 64, 128>}, {pipeline_mode = #tpu.pipeline_mode<synchronous>, transform_indices = @transform_4, window_bounds = array<i64: 1, 128>}, {transform_indices = @transform_5, window_bounds = array<i64: 2, 8>}]} {
    %c0 = arith.constant 0 : index
    %c0_0 = arith.constant 0 : index
    %0 = vector.load %arg1[%c0, %c0_0] : memref<16x64xf32, #tpu.memory_space<vmem>>, vector<16x64xf32>
    %c0_1 = arith.constant 0 : index
    %c0_2 = arith.constant 0 : index
    %1 = vector.load %arg4[%c0_1, %c0_2] : memref<64x128xf32, #tpu.memory_space<vmem>>, vector<64x128xf32>
    %cst = arith.constant dense<0.000000e+00> : vector<16x128xf32>
    %2 = tpu.matmul %0, %1, %cst {dimension_numbers = #tpu.dot_dimension_numbers<[1], [0], [0], [1], [0, 0, 1, 1], [], []>} : vector<16x64xf32>, vector<64x128xf32>, vector<16x128xf32> -> vector<16x128xf32>
    %3 = vector.shape_cast %2 : vector<16x128xf32> to vector<2x8x128xf32>
    %c0_3 = arith.constant 0 : index
    %c0_4 = arith.constant 0 : index
    %c0_5 = arith.constant 0 : index
    %4 = vector.load %arg2[%c0_3, %c0_4, %c0_5] : memref<2x1x128xf32, #tpu.memory_space<vmem>>, vector<2x1x128xf32>
    %5 = vector.broadcast %4 : vector<2x1x128xf32> to vector<2x8x128xf32>
    %6 = arith.addf %3, %5 : vector<2x8x128xf32>
    %7 = math.tanh %6 : vector<2x8x128xf32>
    %c0_6 = arith.constant 0 : index
    %c0_7 = arith.constant 0 : index
    %8 = vector.load %arg5[%c0_6, %c0_7] : memref<1x128xf32, #tpu.memory_space<vmem>>, vector<1x128xf32>
    %9 = vector.shape_cast %8 : vector<1x128xf32> to vector<1x1x128xf32>
    %10 = vector.broadcast %9 : vector<1x1x128xf32> to vector<2x8x128xf32>
    %11 = arith.mulf %7, %10 : vector<2x8x128xf32>
    %cst_8 = arith.constant dense<0.000000e+00> : vector<2x8xf32>
    %12 = vector.multi_reduction <add>, %11, %cst_8 [2] : vector<2x8x128xf32> to vector<2x8xf32>
    %c0_9 = arith.constant 0 : index
    %c0_10 = arith.constant 0 : index
    %13 = vector.load %arg3[%c0_9, %c0_10] : memref<2x8xi32, #tpu.memory_space<vmem>>, vector<2x8xi32>
    %c0_i32 = arith.constant 0 : i32
    %14 = vector.broadcast %c0_i32 : i32 to vector<2x8xi32>
    %15 = arith.cmpi eq, %13, %14 : vector<2x8xi32>
    %cst_11 = arith.constant -1.000000e+30 : f32
    %16 = vector.broadcast %cst_11 : f32 to vector<2x8xf32>
    %17 = arith.select %15, %16, %12 : vector<2x8xi1>, vector<2x8xf32>
    %cst_12 = arith.constant dense<0xFF800000> : vector<2xf32>
    %18 = vector.multi_reduction <maximumf>, %17, %cst_12 [1] : vector<2x8xf32> to vector<2xf32>
    %19 = vector.shape_cast %18 : vector<2xf32> to vector<2x1xf32>
    %20 = vector.broadcast %19 : vector<2x1xf32> to vector<2x8xf32>
    %21 = arith.subf %17, %20 : vector<2x8xf32>
    %22 = math.exp %21 : vector<2x8xf32>
    %cst_13 = arith.constant dense<0.000000e+00> : vector<2xf32>
    %23 = vector.multi_reduction <add>, %22, %cst_13 [1] : vector<2x8xf32> to vector<2xf32>
    %24 = vector.shape_cast %23 : vector<2xf32> to vector<2x1xf32>
    %25 = vector.broadcast %24 : vector<2x1xf32> to vector<2x8xf32>
    %26 = arith.divf %22, %25 : vector<2x8xf32>
    %c0_14 = arith.constant 0 : index
    %c0_15 = arith.constant 0 : index
    %27 = vector.load %arg6[%c0_14, %c0_15] : memref<2x8xf32, #tpu.memory_space<vmem>>, vector<2x8xf32>
    tpu.vector_store %arg6[%c0_14, %c0_15], %26 {strides = array<i32>} : memref<2x8xf32, #tpu.memory_space<vmem>>, vector<2x8xf32>,
    return
  }
  func.func @transform_0(%arg0: i32) -> (i32, i32) {
    %c0_i32 = arith.constant 0 : i32
    %c0_i32_0 = arith.constant 0 : i32
    return %arg0, %c0_i32 : i32, i32
  }
  func.func @transform_1(%arg0: i32) -> (i32, i32, i32) {
    %c0_i32 = arith.constant 0 : i32
    %c0_i32_0 = arith.constant 0 : i32
    %c0_i32_1 = arith.constant 0 : i32
    return %arg0, %c0_i32, %c0_i32_0 : i32, i32, i32
  }
  func.func @transform_2(%arg0: i32) -> (i32, i32) {
    %c0_i32 = arith.constant 0 : i32
    %c0_i32_0 = arith.constant 0 : i32
    return %arg0, %c0_i32 : i32, i32
  }
  func.func @transform_3(%arg0: i32) -> (i32, i32) {
    %c0_i32 = arith.constant 0 : i32
    %c0_i32_0 = arith.constant 0 : i32
    %c0_i32_1 = arith.constant 0 : i32
    return %c0_i32, %c0_i32_0 : i32, i32
  }
  func.func @transform_4(%arg0: i32) -> (i32, i32) {
    %c0_i32 = arith.constant 0 : i32
    %c0_i32_0 = arith.constant 0 : i32
    %c0_i32_1 = arith.constant 0 : i32
    return %c0_i32, %c0_i32_0 : i32, i32
  }
  func.func @transform_5(%arg0: i32) -> (i32, i32) {
    %c0_i32 = arith.constant 0 : i32
    %c0_i32_0 = arith.constant 0 : i32
    return %arg0, %c0_i32 : i32, i32
  }
}

</mosaic_0001>

<llo_original>
// kernel: tpu_custom_call.1
$region0: #{tpu_custom_call.1}
  #allocation0 [shape = 'u32[]', space=smem, size = 0x4, offset = 0x4, fixed_abs, tag = 'smem constant byte address 0x4 - core index']
  #allocation1 [shape = 'u32[72,128]{1,0:T(1,128)}', space=vmem, size = 0x9000, scoped, tag = 'internal scratch']
  %s0 = inlined_call_operand.hbm [shape: f32[16,64], index: 0, kind: input, shape index: {}]
  %s1 = inlined_call_operand.hbm [shape: f32[2,1,128], index: 1, kind: input, shape index: {}]
  %s2 = inlined_call_operand.hbm [shape: s32[2,8], index: 2, kind: input, shape index: {}]
  %s3 = inlined_call_operand.hbm [shape: f32[64,128], index: 3, kind: input, shape index: {}]
  %s4 = inlined_call_operand.vmem [shape: f32[1,128], index: 4, kind: input, shape index: {}]
  %s5 = inlined_call_operand.hbm [shape: f32[2,8], index: 5, kind: output, shape index: {}]
  %s6 = sld [smem:[#allocation0]]
  $region46: #{tpu_custom_call.1} parent=0
    _
  %s8 = ssub.s32 1, %s6
  %s9 = scalar_select 0, %s8, %s6
  $region1: #{tpu_custom_call.1} parent=0
    #allocation2 [shape = 'u8[8192]{0}', space=vmem, size = 0x2000, scoped, tag = 'input window, operand 0, single buffered']
    #allocation3 [shape = 's32[1]{0}', space=sflag, size = 0x4, scoped, tag = 'scoped memory for tpu_custom_call.1']
    #allocation4 [shape = 's32[1]{0}', space=sflag, size = 0x4, scoped, tag = 'scoped memory for tpu_custom_call.1']
    #allocation5 [shape = 'u8[1024]{0}', space=vmem, size = 0x400, scoped, tag = 'input window, operand 1, single buffered']
    #allocation6 [shape = 's32[1]{0}', space=sflag, size = 0x4, scoped, tag = 'scoped memory for tpu_custom_call.1']
    #allocation7 [shape = 'u8[1024]{0}', space=vmem, size = 0x400, scoped, tag = 'input window, operand 2, single buffered']
    #allocation8 [shape = 'u8[32768]{0}', space=vmem, size = 0x8000, scoped, tag = 'input window, operand 3, single buffered']
    #allocation9 [shape = 's32[1]{0}', space=sflag, size = 0x4, scoped, tag = 'scoped memory for tpu_custom_call.1']
    #allocation10 [shape = 'u8[1024]{0}', space=vmem, size = 0x400, scoped, tag = 'output window, operand 0, single buffered']
    %10 = vsyncpa [#allocation3], 0
    %11 = vsyncpa [#allocation6], 0
    %12 = vsyncpa [#allocation9], 0
    %13 = vsyncpa [#allocation4], 0
    // Predicated region
    $region2: #{tpu_custom_call.1} parent=1 // pred_check
      _
    $region3: #{tpu_custom_call.1} parent=1 // pred_check_branch
      %15 = sbr.rel (0) target = $region5
    $region4: #{tpu_custom_call.1} parent=1 // pred_region
      %17 = vsyncadd [#allocation3], 0
      %s18 = sshll.u32 %s0, 4
      %s19 = int_to_ptr.hbm [resolvable:$true] %s18
      %s20 = sshll.u32 [#allocation2], 4
      %s21 = int_to_ptr.vmem [resolvable:$true] %s20
      %26 = dma.hbm_to_vmem [thread:$0]  %s19, 256, %s21, [#allocation3], 128, 128, 8
    $region5: #{tpu_custom_call.1} parent=1 // pred_fallthru
      _
    // Predicated region
    $region6: #{tpu_custom_call.1} parent=1 // pred_check
      _
    $region7: #{tpu_custom_call.1} parent=1 // pred_check_branch
      %28 = sbr.rel (0) target = $region9
    $region8: #{tpu_custom_call.1} parent=1 // pred_region
      %30 = vsyncadd [#allocation6], 0
      %s31 = sshll.u32 %s1, 4
      %s32 = int_to_ptr.hbm [resolvable:$true] %s31
      %s33 = sshll.u32 [#allocation5], 4
      %s34 = int_to_ptr.vmem [resolvable:$true] %s33
      %39 = dma.hbm_to_vmem [thread:$0]  %s32, 32, %s34, [#allocation6], 16, 16, 1
    $region9: #{tpu_custom_call.1} parent=1 // pred_fallthru
      _
    // Predicated region
    $region10: #{tpu_custom_call.1} parent=1 // pred_check
      _
    $region11: #{tpu_custom_call.1} parent=1 // pred_check_branch
      %41 = sbr.rel (0) target = $region13
    $region12: #{tpu_custom_call.1} parent=1 // pred_region
      %43 = vsyncadd [#allocation6], 0
      %s45 = sshll.u32 %s2, 4
      %s46 = int_to_ptr.hbm [resolvable:$true] %s45
      %s47 = sshll.u32 [#allocation7], 4
      %s48 = int_to_ptr.vmem [resolvable:$true] %s47
      %50 = dma.hbm_to_vmem [thread:$0]  %s46, 32, %s48, [#allocation6]
    $region13: #{tpu_custom_call.1} parent=1 // pred_fallthru
      _
    // Predicated region
    $region14: #{tpu_custom_call.1} parent=1 // pred_check
      _
    $region15: #{tpu_custom_call.1} parent=1 // pred_check_branch
      %52 = sbr.rel (0) target = $region17
    $region16: #{tpu_custom_call.1} parent=1 // pred_region
      %54 = vsyncadd [#allocation9], 0
      %s55 = sshll.u32 %s3, 4
      %s56 = int_to_ptr.hbm [resolvable:$true] %s55
      %s57 = sshll.u32 [#allocation8], 4
      %s58 = int_to_ptr.vmem [resolvable:$true] %s57
      %63 = dma.hbm_to_vmem [thread:$0]  %s56, 1024, %s58, [#allocation9], 128, 128, 8
    $region17: #{tpu_custom_call.1} parent=1 // pred_fallthru
      _
    // Predicated region
    $region18: #{tpu_custom_call.1} parent=1 // pred_check
      _
    $region19: #{tpu_custom_call.1} parent=1 // pred_check_branch
      %65 = sbr.rel (0) target = $region21
    $region20: #{tpu_custom_call.1} parent=1 // pred_region
      _
    $region21: #{tpu_custom_call.1} parent=1 // pred_fallthru
      _
    // Predicated region
    $region22: #{tpu_custom_call.1} parent=1 // pred_check
      _
    $region23: #{tpu_custom_call.1} parent=1 // pred_check_branch
      %67 = sbr.rel (0) target = $region25
    $region24: #{tpu_custom_call.1} parent=1 // pred_region
      %69 = dma.done [#allocation3], 256
    $region25: #{tpu_custom_call.1} parent=1 // pred_fallthru
      _
    // Predicated region
    $region26: #{tpu_custom_call.1} parent=1 // pred_check
      _
    $region27: #{tpu_custom_call.1} parent=1 // pred_check_branch
      %71 = sbr.rel (0) target = $region29
    $region28: #{tpu_custom_call.1} parent=1 // pred_region
      %73 = dma.done [#allocation6], 32
    $region29: #{tpu_custom_call.1} parent=1 // pred_fallthru
      _
    // Predicated region
    $region30: #{tpu_custom_call.1} parent=1 // pred_check
      _
    $region31: #{tpu_custom_call.1} parent=1 // pred_check_branch
      %75 = sbr.rel (0) target = $region33
    $region32: #{tpu_custom_call.1} parent=1 // pred_region
      %77 = dma.done [#allocation6], 32
    $region33: #{tpu_custom_call.1} parent=1 // pred_fallthru
      _
    // Predicated region
    $region34: #{tpu_custom_call.1} parent=1 // pred_check
      _
    $region35: #{tpu_custom_call.1} parent=1 // pred_check_branch
      %79 = sbr.rel (0) target = $region37
    $region36: #{tpu_custom_call.1} parent=1 // pred_region
      %81 = dma.done [#allocation9], 1024
    $region37: #{tpu_custom_call.1} parent=1 // pred_fallthru
      _
    %v82 = vld [vmem:[#allocation2] sm:$0xff]
    %v83 = vld [vmem:[#allocation2 + $0x8] sm:$0xff]
    %v84 = vld [vmem:[#allocation8] sm:$0xff]
    %v85 = vld [vmem:[#allocation8 + $0x8] sm:$0xff]
    %v86 = vld [vmem:[#allocation8 + $0x10] sm:$0xff]
    %v87 = vld [vmem:[#allocation8 + $0x18] sm:$0xff]
    %v88 = vld [vmem:[#allocation8 + $0x20] sm:$0xff]
    %v89 = vld [vmem:[#allocation8 + $0x28] sm:$0xff]
    %v90 = vld [vmem:[#allocation8 + $0x30] sm:$0xff]
    %v91 = vld [vmem:[#allocation8 + $0x38] sm:$0xff]
    %vm92 = vcmask 523264
    %v94 = vsel %vm92, %v82, 0
    %v97 = vsel %vm92, %v83, 0
    %99 = vmatpush.msra.mxu0 0.0
    %100 = vmatpush.msra.mxu0 0.0
    %101 = vmatpush.msra.mxu0 0.0
    %102 = vmatpush.msra.mxu0 0.0
    %103 = vmatpush.msra.mxu0 0.0
    %104 = vmatpush.msra.mxu0 0.0
    %105 = vmatpush.msra.mxu0 0.0
    %106 = vmatpush.msra.mxu0 0.0
    %107 = vmatpush.msra.mxu0 %v91
    %108 = vmatpush.msra.mxu0 %v90
    %109 = vmatpush.msra.mxu0 %v89
    %110 = vmatpush.msra.mxu0 %v88
    %111 = vmatpush.msra.mxu0 %v87
    %112 = vmatpush.msra.mxu0 %v86
    %113 = vmatpush.msra.mxu0 %v85
    %114 = vmatpush.msra.mxu0 %v84
    %115 = vmatmul.f32.gmra.mxu0 %v94
    %v116 = vpop.f32.mrf.mxu0
    %v117 = vadd.f32 0.0, %v116
    %118 = vmatmul.f32.gmra.mxu0 %v97
    %v119 = vpop.f32.mrf.mxu0
    %v120 = vadd.f32 0.0, %v119
    %121 = vdwg.mxu0
    %v122 = vld [vmem:[#allocation5] sm:$0x1]
    %v123 = vld [vmem:[#allocation5 + $0x1] sm:$0x1]
    %v126 = vperm.slane %v122, 0
    %v127 = vperm.slane %v123, 0
    %v130 = vadd.f32 %v117, %v126
    %v131 = vadd.f32 %v120, %v127
    %v132 = vtanh.pop %v130
    %v133 = vtanh.pop %v131
    %v134 = vld [vmem:[%s4] sm:$0x1]
    %v136 = vperm.slane %v134, 0
    %v138 = vmul.f32 %v132, %v136
    %v139 = vmul.f32 %v133, %v136
    %140 = vadd.xlane.f32.xlu0 %v138
    %v141 = vpop.xlane.xlu0 %140
    %142 = vadd.xlane.f32.xlu0 %v139
    %v143 = vpop.xlane.xlu0 %142
    %v144 = vld [vmem:[#allocation7] sm:$0x3]
    %vm145 = vcmp.eq.s32.totalorder %v144, 0
    %v148 = vlaneseq
    %v149 = vand.u32 %v148, 127
    %v150 = vperm.slane %v141, %v149
    %v151 = vperm.slane %v143, %v149
    %vm152 = vcmask 1041409
    %v153 = vsel %vm152, %v151, %v150
    %v155 = vsel %vm145, -1e+30, %v153
    %vm156 = vcmask 58368
    %v157 = vsel %vm156, %v155, -inf
    %158 = vmax.xlane.f32.xlu0 %v157
    %v159 = vpop.xlane.xlu0 %158
    %v160 = vsub.f32 %v155, %v159
    %v161 = vmul.f32 %v160, 1.442695
    %v162 = vpow.pop %v161
    %v163 = vsel %vm156, %v162, 0.0
    %164 = vadd.xlane.f32.xlu0 %v163
    %v165 = vpop.xlane.xlu0 %164
    %v166 = vrcp.pop %v165
    %v167 = vmul.f32 %v165, %v166
    %v168 = vsub.f32 1.0, %v167
    %v169 = vmul.f32 %v166, %v168
    %v170 = vadd.f32 %v166, %v169
    %vm171 = vweird.f32 %v165
    %vm172 = vweird.f32 %v166
    %vm173 = vmor %vm171, %vm172
    %v174 = vsel %vm173, %v166, %v170
    %v175 = vand.u32 2147483647, %v165
    %vm176 = vcmp.eq.f32.partialorder %v175, 8.507059e+37
    %v177 = vand.u32 %v165, 2147483648
    %v178 = vor.u32 1.1754944e-38, %v177
    %v179 = vsel %vm176, %v178, %v174
    %v180 = vmul.f32 %v162, %v179
    %181 = vst.msk [vmem:[#allocation10] sm:$0x3] %vm156, %v180
    // Predicated region
    $region38: #{tpu_custom_call.1} parent=1 // pred_check
      _
    $region39: #{tpu_custom_call.1} parent=1 // pred_check_branch
      %183 = sbr.rel (0) target = $region41
    $region40: #{tpu_custom_call.1} parent=1 // pred_region
      %185 = vsyncadd [#allocation4], 0
      %s187 = sshll.u32 [#allocation10], 4
      %s188 = int_to_ptr.vmem [resolvable:$true] %s187
      %s189 = sshll.u32 %s5, 4
      %s190 = int_to_ptr.hbm [resolvable:$true] %s189
      %192 = dma.vmem_to_hbm [thread:$0]  %s188, 32, %s190, [#allocation4]
    $region41: #{tpu_custom_call.1} parent=1 // pred_fallthru
      _
    // Predicated region
    $region42: #{tpu_custom_call.1} parent=1 // pred_check
      _
    $region43: #{tpu_custom_call.1} parent=1 // pred_check_branch
      %194 = sbr.rel (0) target = $region45
    $region44: #{tpu_custom_call.1} parent=1 // pred_region
      %196 = dma.done [#allocation4], 32
    $region45: #{tpu_custom_call.1} parent=1 // pred_fallthru
      _
    %197 = vsyncpa [#allocation3], 1
    %198 = vsyncpa [#allocation6], 1
    %199 = vsyncpa [#allocation9], 1
    %200 = vsyncpa [#allocation4], 1

</llo_original>
